<compile_context>
chip_gen: v7x
topology: tpu7x:2x2x1
jax: 0.10.0
libtpu: 0.0.40
codegen_flags: <defaults>
</compile_context>

<pallas_src>
import jax
import jax.numpy as jnp
from jax.experimental import pallas as pl
from jax.experimental.pallas import tpu as pltpu


def _proj_kernel(p_ref, w_ref, b_ref, o_ref):
    # p_ref: (TM, K) patch tile (streams over M); w_ref: (K, E) resident weight;
    # b_ref: (1, E) f32 bias; o_ref: (TM, E) output tile.
    acc = jnp.dot(p_ref[...], w_ref[...], preferred_element_type=jnp.float32)
    o_ref[...] = (acc + b_ref[...]).astype(o_ref.dtype)


def _choose_tile_m(M, tile_m):
    """Pick an M tile: full-extent for small M, else a multiple of 128 with >=4 tiles."""
    if M <= tile_m:
        return M                                  # single full-extent block (always legal)
    tm = max(128, (tile_m // 128) * 128)          # 128-aligned: bf16 packing + MXU feeds
    while tm > 128 and pl.cdiv(M, tm) < 4:        # >=4 tiles -> balances v7x's 2 TensorCores
        tm //= 2
    return tm


def patch_embed_forward(x, weight, bias, patch_size, *,
                        compute_dtype=jnp.bfloat16, out_dtype=None, tile_m=1024):
    """x: (B, C, H, W); weight: (embed_dim, C*p*p) [torch Linear layout]; bias: (embed_dim,).

    Returns (B, num_patches, embed_dim) in `out_dtype` (defaults to compute_dtype;
    downstream consumers needing f32 should pass out_dtype=jnp.float32).
    """
    B, C, H, W = x.shape
    p = patch_size
    nh, nw = H // p, W // p
    num_patches = nh * nw
    K = C * p * p
    E = weight.shape[0]
    M = B * num_patches
    out_dtype = compute_dtype if out_dtype is None else out_dtype

    # --- glue: patch extraction, identical semantics to torch unfold/permute/reshape.
    # XLA fuses this transpose-copy with the dtype cast into one HBM pass.
    patches = x.reshape(B, C, nh, p, nw, p)
    patches = jnp.transpose(patches, (0, 2, 4, 1, 3, 5))      # (B, nh, nw, C, p, p)
    patches = patches.reshape(M, K).astype(compute_dtype)

    w_t = weight.T.astype(compute_dtype)                      # (K, E), resident in VMEM
    b2 = bias.astype(jnp.float32).reshape(1, E)               # bias added in f32

    TM = _choose_tile_m(M, tile_m)
    grid_m = pl.cdiv(M, TM)       # ragged last tile handled by Pallas with masked stores

    cost = pl.CostEstimate(
        flops=2 * M * K * E,
        transcendentals=0,
        bytes_accessed=(patches.size * patches.dtype.itemsize
                        + w_t.size * w_t.dtype.itemsize
                        + b2.size * b2.dtype.itemsize
                        + M * E * jnp.dtype(out_dtype).itemsize),
    )

    cd = jnp.dtype(compute_dtype).itemsize
    od = jnp.dtype(out_dtype).itemsize
    vmem_needed = (2 * TM * K * cd        # streaming patch tiles (double-buffered)
                   + 2 * K * E * cd       # resident weight (2 buffers allocated)
                   + 2 * E * 4            # resident bias
                   + 2 * TM * E * od)     # output tiles (double-buffered)
    vmem_limit = int(min(max(2 * vmem_needed, 16 * 1024 * 1024), 48 * 1024 * 1024))

    out = pl.pallas_call(
        _proj_kernel,
        out_shape=jax.ShapeDtypeStruct((M, E), out_dtype),
        grid=(grid_m,),
        in_specs=[
            pl.BlockSpec((TM, K), lambda i: (i, 0)),   # patch tiles stream over M
            pl.BlockSpec((K, E), lambda i: (0, 0)),    # weight resident (fetched once)
            pl.BlockSpec((1, E), lambda i: (0, 0)),    # bias resident
        ],
        out_specs=pl.BlockSpec((TM, E), lambda i: (i, 0)),
        compiler_params=pltpu.CompilerParams(
            dimension_semantics=("parallel",),         # M tiles independent (2 TCs on v7x)
            vmem_limit_bytes=vmem_limit,
        ),
        cost_estimate=cost,
    )(patches, w_t, b2)

    return out.reshape(B, num_patches, E)               # free (row-major metadata reshape)


def reference_forward(x, weight, bias, patch_size):
    """Pure-JAX f32 reference replicating the torch forward exactly."""
    B, C, H, W = x.shape
    p = patch_size
    nh, nw = H // p, W // p
    patches = x.reshape(B, C, nh, p, nw, p)
    patches = jnp.transpose(patches, (0, 2, 4, 1, 3, 5))
    patches = patches.reshape(B, nh * nw, C * p * p)
    return patches @ weight.T + bias


if __name__ == "__main__":
    # Small, module-consistent shapes.
    B, C, H, W = 2, 4, 16, 16
    patch_size = 4
    embed_dim = 32
    K = C * patch_size * patch_size                       # 64
    num_patches = (H // patch_size) * (W // patch_size)   # 16

    key = jax.random.PRNGKey(0)
    kx, kw, kb = jax.random.split(key, 3)
    x = jax.random.normal(kx, (B, C, H, W), dtype=jnp.float32)
    bound = 1.0 / (K ** 0.5)
    weight = jax.random.uniform(kw, (embed_dim, K), minval=-bound, maxval=bound,
                                dtype=jnp.float32)
    bias = jax.random.uniform(kb, (embed_dim,), minval=-bound, maxval=bound,
                              dtype=jnp.float32)

    ref = reference_forward(x, weight, bias, patch_size)

    # Exact-path check (f32 compute + f32 output): validates tiling / masking / bias exactly.
    out_f32 = patch_embed_forward(x, weight, bias, patch_size,
                                  compute_dtype=jnp.float32, out_dtype=jnp.float32)
    out_f32 = jax.block_until_ready(out_f32)
    assert out_f32.shape == (B, num_patches, embed_dim), out_f32.shape
    assert jnp.allclose(out_f32, ref, atol=1e-5, rtol=1e-5), "f32 mismatch vs reference"

    # Performance path (bf16 operands + bf16 output, f32 accumulate): looser tolerance.
    out = patch_embed_forward(x, weight, bias, patch_size)
    out = jax.block_until_ready(out)
    assert out.shape == (B, num_patches, embed_dim), out.shape
    assert out.dtype == jnp.bfloat16, out.dtype
    assert jnp.allclose(out.astype(jnp.float32), ref, atol=5e-2, rtol=5e-2), \
        "bf16 mismatch vs reference"

    print("KERNEL_OK")
</pallas_src>

<mosaic_0001>
module attributes {stable_mosaic.version = 11 : i64} {
  func.func @_proj_kernel(%arg0: i32, %arg1: memref<32x64xf32, #tpu.memory_space<vmem>>, %arg2: memref<64x32xf32, #tpu.memory_space<vmem>>, %arg3: memref<1x32xf32, #tpu.memory_space<vmem>>, %arg4: memref<32x32xf32, #tpu.memory_space<vmem>>) attributes {dimension_semantics = [#tpu.dimension_semantics<parallel>], iteration_bounds = array<i64: 1>, scalar_prefetch = 0 : i64, scratch_operands = 0 : i64, tpu.core_type = #tpu.core_type<tc>, window_params = [{transform_indices = @transform_0, window_bounds = array<i64: 32, 64>}, {pipeline_mode = #tpu.pipeline_mode<synchronous>, transform_indices = @transform_1, window_bounds = array<i64: 64, 32>}, {pipeline_mode = #tpu.pipeline_mode<synchronous>, transform_indices = @transform_2, window_bounds = array<i64: 1, 32>}, {transform_indices = @transform_3, window_bounds = array<i64: 32, 32>}]} {
    %c0 = arith.constant 0 : index
    %c0_0 = arith.constant 0 : index
    %0 = vector.load %arg1[%c0, %c0_0] : memref<32x64xf32, #tpu.memory_space<vmem>>, vector<32x64xf32>
    %c0_1 = arith.constant 0 : index
    %c0_2 = arith.constant 0 : index
    %1 = vector.load %arg2[%c0_1, %c0_2] : memref<64x32xf32, #tpu.memory_space<vmem>>, vector<64x32xf32>
    %cst = arith.constant dense<0.000000e+00> : vector<32x32xf32>
    %2 = tpu.matmul %0, %1, %cst {dimension_numbers = #tpu.dot_dimension_numbers<[1], [0], [0], [1], [0, 0, 1, 1], [], []>} : vector<32x64xf32>, vector<64x32xf32>, vector<32x32xf32> -> vector<32x32xf32>
    %c0_3 = arith.constant 0 : index
    %c0_4 = arith.constant 0 : index
    %3 = vector.load %arg3[%c0_3, %c0_4] : memref<1x32xf32, #tpu.memory_space<vmem>>, vector<1x32xf32>
    %4 = vector.broadcast %3 : vector<1x32xf32> to vector<32x32xf32>
    %5 = arith.addf %2, %4 : vector<32x32xf32>
    %c0_5 = arith.constant 0 : index
    %c0_6 = arith.constant 0 : index
    %6 = vector.load %arg4[%c0_5, %c0_6] : memref<32x32xf32, #tpu.memory_space<vmem>>, vector<32x32xf32>
    tpu.vector_store %arg4[%c0_5, %c0_6], %5 {strides = array<i32>} : memref<32x32xf32, #tpu.memory_space<vmem>>, vector<32x32xf32>,
    return
  }
  func.func @transform_0(%arg0: i32) -> (i32, i32) {
    %c0_i32 = arith.constant 0 : i32
    %c0_i32_0 = arith.constant 0 : i32
    return %arg0, %c0_i32 : i32, i32
  }
  func.func @transform_1(%arg0: i32) -> (i32, i32) {
    %c0_i32 = arith.constant 0 : i32
    %c0_i32_0 = arith.constant 0 : i32
    %c0_i32_1 = arith.constant 0 : i32
    return %c0_i32, %c0_i32_0 : i32, i32
  }
  func.func @transform_2(%arg0: i32) -> (i32, i32) {
    %c0_i32 = arith.constant 0 : i32
    %c0_i32_0 = arith.constant 0 : i32
    %c0_i32_1 = arith.constant 0 : i32
    return %c0_i32, %c0_i32_0 : i32, i32
  }
  func.func @transform_3(%arg0: i32) -> (i32, i32) {
    %c0_i32 = arith.constant 0 : i32
    %c0_i32_0 = arith.constant 0 : i32
    return %arg0, %c0_i32 : i32, i32
  }
}

</mosaic_0001>

<llo_original>
// kernel: tpu_custom_call.1
$region0: #{tpu_custom_call.1}
  #allocation0 [shape = 'u32[]', space=smem, size = 0x4, offset = 0x4, fixed_abs, tag = 'smem constant byte address 0x4 - core index']
  #allocation1 [shape = 'u32[144,128]{1,0:T(1,128)}', space=vmem, size = 0x12000, scoped, tag = 'internal scratch']
  %s0 = inlined_call_operand.vmem [shape: f32[32,64], index: 0, kind: input, shape index: {}]
  %s1 = inlined_call_operand.vmem [shape: f32[64,32], index: 1, kind: input, shape index: {}]
  %s2 = inlined_call_operand.vmem [shape: f32[1,32], index: 2, kind: input, shape index: {}]
  %s3 = inlined_call_operand.hbm [shape: f32[32,32], index: 3, kind: output, shape index: {}]
  %s4 = sld [smem:[#allocation0]]
  $region22: #{tpu_custom_call.1} parent=0
    _
  %s6 = ssub.s32 1, %s4
  %s7 = scalar_select 0, %s6, %s4
  $region1: #{tpu_custom_call.1} parent=0
    #allocation2 [shape = 'u8[16384]{0}', space=vmem, size = 0x4000, scoped, tag = 'output window, operand 0, single buffered']
    #allocation3 [shape = 's32[1]{0}', space=sflag, size = 0x4, scoped, tag = 'scoped memory for tpu_custom_call.1']
    %8 = vsyncpa [#allocation3], 0
    // Predicated region
    $region2: #{tpu_custom_call.1} parent=1 // pred_check
      _
    $region3: #{tpu_custom_call.1} parent=1 // pred_check_branch
      %10 = sbr.rel (0) target = $region5
    $region4: #{tpu_custom_call.1} parent=1 // pred_region
      _
    $region5: #{tpu_custom_call.1} parent=1 // pred_fallthru
      _
    // Predicated region
    $region6: #{tpu_custom_call.1} parent=1 // pred_check
      _
    $region7: #{tpu_custom_call.1} parent=1 // pred_check_branch
      %12 = sbr.rel (0) target = $region9
    $region8: #{tpu_custom_call.1} parent=1 // pred_region
      _
    $region9: #{tpu_custom_call.1} parent=1 // pred_fallthru
      _
    // Predicated region
    $region10: #{tpu_custom_call.1} parent=1 // pred_check
      _
    $region11: #{tpu_custom_call.1} parent=1 // pred_check_branch
      %14 = sbr.rel (0) target = $region13
    $region12: #{tpu_custom_call.1} parent=1 // pred_region
      _
    $region13: #{tpu_custom_call.1} parent=1 // pred_fallthru
      _
    %v15 = vld [vmem:[%s0] sm:$0xff]
    %v16 = vld [vmem:[%s0 + $0x8] sm:$0xff]
    %v17 = vld [vmem:[%s0 + $0x10] sm:$0xff]
    %v18 = vld [vmem:[%s0 + $0x18] sm:$0xff]
    %v19 = vld [vmem:[%s1] sm:$0xff]
    %v20 = vld [vmem:[%s1 + $0x8] sm:$0xff]
    %v21 = vld [vmem:[%s1 + $0x10] sm:$0xff]
    %v22 = vld [vmem:[%s1 + $0x18] sm:$0xff]
    %v23 = vld [vmem:[%s1 + $0x20] sm:$0xff]
    %v24 = vld [vmem:[%s1 + $0x28] sm:$0xff]
    %v25 = vld [vmem:[%s1 + $0x30] sm:$0xff]
    %v26 = vld [vmem:[%s1 + $0x38] sm:$0xff]
    %v27 = vld [vmem:[%s2] sm:$0x1]
    %v29 = vlaneseq
    %v30 = vshrl.u32 %v29, 7
    %v31 = vsub.s32 0, %v30
    %v32 = vrot.slane %v27, %v31
    %vm34 = vcmask 523264
    %v36 = vsel %vm34, %v15, 0
    %v39 = vsel %vm34, %v16, 0
    %v42 = vsel %vm34, %v17, 0
    %v45 = vsel %vm34, %v18, 0
    %47 = vmatprep.subr.mxu0 0.0
    %48 = vmatpush1.msra.mxu0 %v19
    %49 = vmatprep.subr.mxu0 0.0
    %50 = vmatpush1.msra.mxu0 %v20
    %51 = vmatprep.subr.mxu0 0.0
    %52 = vmatpush1.msra.mxu0 %v21
    %53 = vmatprep.subr.mxu0 0.0
    %54 = vmatpush1.msra.mxu0 %v22
    %55 = vmatprep.subr.mxu0 0.0
    %56 = vmatpush1.msra.mxu0 %v23
    %57 = vmatprep.subr.mxu0 0.0
    %58 = vmatpush1.msra.mxu0 %v24
    %59 = vmatprep.subr.mxu0 0.0
    %60 = vmatpush1.msra.mxu0 %v25
    %61 = vmatprep.subr.mxu0 0.0
    %62 = vmatpush1.msra.mxu0 %v26
    %63 = vmatprep.subr.mxu0 0.0
    %64 = vmatpush1.msra.mxu0 0.0
    %65 = vmatprep.subr.mxu0 0.0
    %66 = vmatpush1.msra.mxu0 0.0
    %67 = vmatprep.subr.mxu0 0.0
    %68 = vmatpush1.msra.mxu0 0.0
    %69 = vmatprep.subr.mxu0 0.0
    %70 = vmatpush1.msra.mxu0 0.0
    %71 = vmatprep.subr.mxu0 0.0
    %72 = vmatpush1.msra.mxu0 0.0
    %73 = vmatprep.subr.mxu0 0.0
    %74 = vmatpush1.msra.mxu0 0.0
    %75 = vmatprep.subr.mxu0 0.0
    %76 = vmatpush1.msra.mxu0 0.0
    %77 = vmatprep.subr.mxu0 0.0
    %78 = vmatpush1.msra.mxu0 0.0
    %79 = vmatprep.subr.mxu0 0.0
    %80 = vmatpush1.msra.mxu0 0.0
    %81 = vmatprep.subr.mxu0 0.0
    %82 = vmatpush1.msra.mxu0 0.0
    %83 = vmatprep.subr.mxu0 0.0
    %84 = vmatpush1.msra.mxu0 0.0
    %85 = vmatprep.subr.mxu0 0.0
    %86 = vmatpush1.msra.mxu0 0.0
    %87 = vmatprep.subr.mxu0 0.0
    %88 = vmatpush1.msra.mxu0 0.0
    %89 = vmatprep.subr.mxu0 0.0
    %90 = vmatpush1.msra.mxu0 0.0
    %91 = vmatprep.subr.mxu0 0.0
    %92 = vmatpush1.msra.mxu0 0.0
    %93 = vmatprep.subr.mxu0 0.0
    %94 = vmatpush1.msra.mxu0 0.0
    %95 = vmatprep.subr.mxu0 0.0
    %96 = vmatpush1.msra.mxu0 0.0
    %97 = vmatprep.subr.mxu0 0.0
    %98 = vmatpush1.msra.mxu0 0.0
    %99 = vmatprep.subr.mxu0 0.0
    %100 = vmatpush1.msra.mxu0 0.0
    %101 = vmatprep.subr.mxu0 0.0
    %102 = vmatpush1.msra.mxu0 0.0
    %103 = vmatprep.subr.mxu0 0.0
    %104 = vmatpush1.msra.mxu0 0.0
    %105 = vmatprep.subr.mxu0 0.0
    %106 = vmatpush1.msra.mxu0 0.0
    %107 = vmatprep.subr.mxu0 0.0
    %108 = vmatpush1.msra.mxu0 0.0
    %109 = vmatprep.subr.mxu0 0.0
    %110 = vmatpush1.msra.mxu0 0.0
    %111 = vmatprep.mubr.f32.mxu0 0.0
    %112 = vmatmul.mubr.f32.gmra.mrb[0].mxu0 %v36
    %v113 = vpop.f32.mrb[0].mxu0
    %v114 = vadd.f32 %v32, %v113
    %v115 = vpop.f32.mrb[0].mxu0
    %116 = vmatprep.mubr.f32.mxu0 0.0
    %117 = vmatmul.mubr.f32.gmra.mrb[0].mxu0 %v39
    %v118 = vpop.f32.mrb[0].mxu0
    %v119 = vadd.f32 %v32, %v118
    %v120 = vpop.f32.mrb[0].mxu0
    %121 = vmatprep.mubr.f32.mxu0 0.0
    %122 = vmatmul.mubr.f32.gmra.mrb[0].mxu0 %v42
    %v123 = vpop.f32.mrb[0].mxu0
    %v124 = vadd.f32 %v32, %v123
    %v125 = vpop.f32.mrb[0].mxu0
    %126 = vmatprep.mubr.f32.mxu0 0.0
    %127 = vmatmul.mubr.f32.gmra.mrb[0].mxu0 %v45
    %v128 = vpop.f32.mrb[0].mxu0
    %v129 = vadd.f32 %v32, %v128
    %v130 = vpop.f32.mrb[0].mxu0
    %131 = vdwg.mxu0
    %vm132 = vcmask 261120
    %133 = vst.msk [vmem:[#allocation2] sm:$0xff] %vm132, %v114
    %134 = vst.msk [vmem:[#allocation2 + $0x8] sm:$0xff] %vm132, %v119
    %135 = vst.msk [vmem:[#allocation2 + $0x10] sm:$0xff] %vm132, %v124
    %136 = vst.msk [vmem:[#allocation2 + $0x18] sm:$0xff] %vm132, %v129
    // Predicated region
    $region14: #{tpu_custom_call.1} parent=1 // pred_check
      _
    $region15: #{tpu_custom_call.1} parent=1 // pred_check_branch
      %138 = sbr.rel (0) target = $region17
    $region16: #{tpu_custom_call.1} parent=1 // pred_region
      %s140 = ssub.s32 512, 512
      %141 = vsyncadd [#allocation3], %s140
      %s142 = sshll.u32 [#allocation2], 4
      %s143 = int_to_ptr.vmem [resolvable:$true] %s142
      %148 = dma.vmem_to_hbm [thread:$0]  %s143, 512, %s3, [#allocation3], 128, 128, 8
    $region17: #{tpu_custom_call.1} parent=1 // pred_fallthru
      _
    // Predicated region
    $region18: #{tpu_custom_call.1} parent=1 // pred_check
      _
    $region19: #{tpu_custom_call.1} parent=1 // pred_check_branch
      %150 = sbr.rel (0) target = $region21
    $region20: #{tpu_custom_call.1} parent=1 // pred_region
      %151 = dma.done [#allocation3], 512
    $region21: #{tpu_custom_call.1} parent=1 // pred_fallthru
      _
    %152 = vsyncpa [#allocation3], 1

</llo_original>
